<compile_context>
chip_gen: v7x
topology: tpu7x:2x2x1
jax: 0.10.0
libtpu: 0.0.40
codegen_flags: <defaults>
</compile_context>

<pallas_src>
import jax
import jax.numpy as jnp
from jax.experimental import pallas as pl
from jax.experimental.pallas import tpu as pltpu


def _round_up(x, m):
    return ((x + m - 1) // m) * m


def _vmem_capacity_bytes():
    """Physical VMEM per TensorCore; conservative fallback = v7x's 64 MiB."""
    try:
        info = pltpu.get_tpu_info()
        for attr in ("vmem_capacity_bytes", "vmem_capacity", "vmem_bytes"):
            v = getattr(info, attr, None)
            if v:
                return int(v)
    except Exception:
        pass
    return 64 * 1024 * 1024


def _num_tensorcores():
    """TensorCores per chip (v7x: 2, v5e/v6e: 1); conservative fallback = 1."""
    try:
        info = pltpu.get_tpu_info()
        for attr in ("num_cores", "core_count", "tensorcore_count", "num_tensorcores"):
            v = getattr(info, attr, None)
            if v:
                return int(v)
    except Exception:
        pass
    try:
        if "v7" in jax.devices()[0].device_kind.lower():
            return 2
    except Exception:
        pass
    return 1


def _patch_embed_kernel(x_ref, w_ref, b_ref, o_ref):
    # x_ref: (tm, K) bf16 patch rows; w_ref: (K, tn) bf16; b_ref: (1, tn) f32;
    # o_ref: (tm, tn).  One MXU matmul with f32 accumulation, bias add in f32.
    acc = jnp.dot(x_ref[...], w_ref[...], preferred_element_type=jnp.float32)
    o_ref[...] = (acc + b_ref[...]).astype(o_ref.dtype)


def patch_embedding(x, weight, bias, patch_size):
    """x: (B, C, H, W) NCHW; weight: (E, C, P, P); bias: (E,) -> (B, n_patches, E)."""
    B, C, H, W = x.shape
    E = weight.shape[0]
    P = patch_size
    hp, wp = H // P, W // P
    n_patches = hp * wp
    M = B * n_patches
    K = C * P * P
    out_dtype = x.dtype
    out_itemsize = jnp.dtype(out_dtype).itemsize

    # --- glue: non-overlapping patch extraction -> (M, K), K ordered (C,ph,pw).
    # Pure layout plumbing; allow_input_fusion below lets XLA fold the transpose
    # + bf16 cast into the kernel's input DMA.  Deliberately NO jnp.pad here —
    # the ragged M tail is handled by the Pallas grid so the fusion chain stays
    # intact (no extra (M, K) HBM slab).
    xp = x.reshape(B, C, hp, P, wp, P)
    xp = jnp.transpose(xp, (0, 2, 4, 1, 3, 5)).reshape(M, K)
    xp = xp.astype(jnp.bfloat16)                       # MXU-native operand dtype
    # TODO(synk): K is left un-padded; lane-padding K to 128 would reintroduce a
    # pad into this fused producer (the thing the M-axis change just removed).

    # --- lane-density of output / weight -------------------------------------
    # E multiple of 128 -> already lane-dense.  E < 128 -> keep exact E (masked
    # store is cheaper than 2-4x output write amplification in this mem-bound
    # regime).  Otherwise pad E up to 128 lanes for unmasked stores.
    if E % 128 == 0 or E < 128:
        Ep = E
    else:
        Ep = _round_up(E, 128)

    # --- generation-aware VMEM budget ----------------------------------------
    vmem_cap = _vmem_capacity_bytes()                  # 128 MiB v5e/v6e, 64 MiB v7x
    budget = (3 * vmem_cap) // 4                       # ~96 MiB / ~48 MiB
    n_cores = _num_tensorcores()

    # --- M tiling: 512/256-class tiles feed the 256-wide v6e/v7x MXU and give
    # the pipeline room to overlap DMA with MXU work.  Small M: single grid step
    # on single-TC chips (grid is a serial loop there); two balanced tiles on
    # the 2-TC v7x so both cores get work.
    if M >= 1024:
        tm = 512
    elif M >= 512:
        tm = 256
    elif M >= 256:
        tm = 128
    elif n_cores >= 2 and M > 16:
        tm = max(8, _round_up(pl.cdiv(M, 2), 8))       # two balanced tiles (v7x)
    else:
        tm = M                                         # one grid step (v5e/v6e)

    def vmem_bytes(tm_, tn_):
        return (2 * tm_ * K * 2                        # x tile, double-buffered bf16
                + 2 * K * tn_ * 2                      # weight tile, double-buffered bf16
                + 2 * 8 * tn_ * 4                      # bias (sublane-padded)
                + 2 * tm_ * tn_ * out_itemsize)        # out tile, double-buffered

    # Keep the whole (K, Ep) weight VMEM-resident when it fits; otherwise tile
    # the embedding (N) axis *before* sacrificing the MXU-critical M tile.
    tn = Ep
    if Ep > 256 and vmem_bytes(tm, tn) > budget:
        tn = 256                                       # MXU-native N tile (v6e/v7x)
        Ep = _round_up(Ep, tn)                         # exact N grid
    # Last resort: shrink tm, stepping on 256-multiples first (MXU occupancy).
    while tm > 8 and vmem_bytes(tm, tn) > budget:
        if tm > 256:
            tm -= 256
        elif tm > 128:
            tm = 128
        else:
            tm = max(8, _round_up(tm // 2, 8))

    # --- weight / bias prep (cache/hoist this for repeated inference calls) ---
    wm = weight.reshape(E, K).T.astype(jnp.bfloat16)   # (K, E)
    bm = bias.astype(jnp.float32).reshape(1, E)
    if Ep != E:
        wm = jnp.pad(wm, ((0, 0), (0, Ep - E)))        # zero cols -> sliced off
        bm = jnp.pad(bm, ((0, 0), (0, Ep - E)))

    Mg = pl.cdiv(M, tm)                                # ragged tail handled by Pallas
    Ng = Ep // tn
    grid = (Ng, Mg)                                    # j outer: weight block stays
                                                       # resident across the inner M sweep

    out = pl.pallas_call(
        _patch_embed_kernel,
        out_shape=jax.ShapeDtypeStruct((M, Ep), out_dtype),
        grid_spec=pltpu.PrefetchScalarGridSpec(
            num_scalar_prefetch=0,
            grid=grid,
            in_specs=[
                pl.BlockSpec((tm, K), lambda j, i: (i, 0)),
                pl.BlockSpec((K, tn), lambda j, i: (0, j)),   # constant across inner loop
                pl.BlockSpec((1, tn), lambda j, i: (0, j)),
            ],
            out_specs=pl.BlockSpec((tm, tn), lambda j, i: (i, j)),
        ),
        compiler_params=pltpu.CompilerParams(
            dimension_semantics=("parallel", "parallel"),     # shard across TCs (v7x)
            allow_input_fusion=[True, False, False],          # fuse patch transpose/cast
            vmem_limit_bytes=int(min(vmem_cap, budget + (8 << 20))),
        ),
        cost_estimate=pl.CostEstimate(
            flops=2 * M * K * Ep,
            transcendentals=0,
            bytes_accessed=(M * K * 2 + K * Ep * 2 + Ep * 4 + M * Ep * out_itemsize),
        ),
    )(xp, wm, bm)

    if Ep != E:
        out = out[:, :E]
    return out.reshape(B, n_patches, E)


if __name__ == "__main__":
    # Small shapes consistent with the module: img_size=16, patch_size=4,
    # in_channels=4, embed_dim=32, batch=2  ->  n_patches = (16//4)**2 = 16
    B, C, H, W = 2, 4, 16, 16
    P, E = 4, 32

    key = jax.random.PRNGKey(0)
    kx, kw, kb = jax.random.split(key, 3)
    x = jax.random.normal(kx, (B, C, H, W), dtype=jnp.float32)
    # Deterministic parameter init (synthetic; shapes match nn.Conv2d(C, E, P, P))
    weight = jax.random.normal(kw, (E, C, P, P), dtype=jnp.float32) * 0.02
    bias = jax.random.normal(kb, (E,), dtype=jnp.float32) * 0.02

    fn = jax.jit(patch_embedding, static_argnums=3)
    out = jax.block_until_ready(fn(x, weight, bias, P))
    assert out.shape == (B, (H // P) * (W // P), E), out.shape

    # Cross-check against a pure-JAX reference at matching precision
    # (bf16 inputs, f32 accumulation).
    xr = x.astype(jnp.bfloat16).astype(jnp.float32)
    wr = weight.astype(jnp.bfloat16).astype(jnp.float32)
    ref = jax.lax.conv_general_dilated(
        xr, wr, window_strides=(P, P), padding="VALID",
        dimension_numbers=("NCHW", "OIHW", "NCHW"),
    ) + bias[None, :, None, None]
    ref = ref.reshape(B, E, -1).transpose(0, 2, 1)
    assert jnp.allclose(out, ref, atol=2e-3, rtol=2e-3), \
        float(jnp.max(jnp.abs(out - ref)))

    print("KERNEL_OK")
</pallas_src>

<mosaic_0001>
module attributes {stable_mosaic.version = 11 : i64} {
  func.func @_patch_embed_kernel(%arg0: i32, %arg1: i32, %arg2: memref<32x64xbf16, #tpu.memory_space<vmem>>, %arg3: memref<64x32xbf16, #tpu.memory_space<vmem>>, %arg4: memref<1x32xf32, #tpu.memory_space<vmem>>, %arg5: memref<32x32xf32, #tpu.memory_space<vmem>>) attributes {dimension_semantics = [#tpu.dimension_semantics<parallel>, #tpu.dimension_semantics<parallel>], iteration_bounds = array<i64: 1, 1>, scalar_prefetch = 0 : i64, scratch_operands = 0 : i64, tpu.core_type = #tpu.core_type<tc>, window_params = [{transform_indices = @transform_0, window_bounds = array<i64: 32, 64>}, {transform_indices = @transform_1, window_bounds = array<i64: 64, 32>}, {transform_indices = @transform_2, window_bounds = array<i64: 1, 32>}, {transform_indices = @transform_3, window_bounds = array<i64: 32, 32>}]} {
    %c0 = arith.constant 0 : index
    %c0_0 = arith.constant 0 : index
    %0 = vector.load %arg2[%c0, %c0_0] : memref<32x64xbf16, #tpu.memory_space<vmem>>, vector<32x64xbf16>
    %c0_1 = arith.constant 0 : index
    %c0_2 = arith.constant 0 : index
    %1 = vector.load %arg3[%c0_1, %c0_2] : memref<64x32xbf16, #tpu.memory_space<vmem>>, vector<64x32xbf16>
    %cst = arith.constant dense<0.000000e+00> : vector<32x32xf32>
    %2 = tpu.matmul %0, %1, %cst {dimension_numbers = #tpu.dot_dimension_numbers<[1], [0], [0], [1], [0, 0, 1, 1], [], []>} : vector<32x64xbf16>, vector<64x32xbf16>, vector<32x32xf32> -> vector<32x32xf32>
    %c0_3 = arith.constant 0 : index
    %c0_4 = arith.constant 0 : index
    %3 = vector.load %arg4[%c0_3, %c0_4] : memref<1x32xf32, #tpu.memory_space<vmem>>, vector<1x32xf32>
    %4 = vector.broadcast %3 : vector<1x32xf32> to vector<32x32xf32>
    %5 = arith.addf %2, %4 : vector<32x32xf32>
    %c0_5 = arith.constant 0 : index
    %c0_6 = arith.constant 0 : index
    %6 = vector.load %arg5[%c0_5, %c0_6] : memref<32x32xf32, #tpu.memory_space<vmem>>, vector<32x32xf32>
    tpu.vector_store %arg5[%c0_5, %c0_6], %5 {strides = array<i32>} : memref<32x32xf32, #tpu.memory_space<vmem>>, vector<32x32xf32>,
    return
  }
  func.func @transform_0(%arg0: i32, %arg1: i32) -> (i32, i32) {
    %c0_i32 = arith.constant 0 : i32
    %c0_i32_0 = arith.constant 0 : i32
    return %arg1, %c0_i32 : i32, i32
  }
  func.func @transform_1(%arg0: i32, %arg1: i32) -> (i32, i32) {
    %c0_i32 = arith.constant 0 : i32
    %c0_i32_0 = arith.constant 0 : i32
    return %c0_i32, %arg0 : i32, i32
  }
  func.func @transform_2(%arg0: i32, %arg1: i32) -> (i32, i32) {
    %c0_i32 = arith.constant 0 : i32
    %c0_i32_0 = arith.constant 0 : i32
    return %c0_i32, %arg0 : i32, i32
  }
  func.func @transform_3(%arg0: i32, %arg1: i32) -> (i32, i32) {
    %c0_i32 = arith.constant 0 : i32
    return %arg1, %arg0 : i32, i32
  }
}

</mosaic_0001>

<llo_original>
// kernel: patch_embedding.1
$region0: #{patch_embedding.1}
  #allocation0 [shape = 'u32[]', space=smem, size = 0x4, offset = 0x4, fixed_abs, tag = 'smem constant byte address 0x4 - core index']
  #allocation1 [shape = 'u32[144,128]{1,0:T(1,128)}', space=vmem, size = 0x12000, scoped, tag = 'internal scratch']
  %s0 = inlined_call_operand.vmem [shape: bf16[32,64], index: 0, kind: input, shape index: {}]
  %s1 = inlined_call_operand.vmem [shape: bf16[64,32], index: 1, kind: input, shape index: {}]
  %s2 = inlined_call_operand.vmem [shape: f32[1,32], index: 2, kind: input, shape index: {}]
  %s3 = inlined_call_operand.hbm [shape: f32[32,32], index: 3, kind: output, shape index: {}]
  %s4 = sld [smem:[#allocation0]]
  $region22: #{patch_embedding.1} parent=0
    _
  %s6 = ssub.s32 1, %s4
  %s7 = scalar_select 0, %s6, %s4
  $region1: #{patch_embedding.1} parent=0
    #allocation2 [shape = 'u8[16384]{0}', space=vmem, size = 0x4000, scoped, tag = 'output window, operand 0, single buffered']
    #allocation3 [shape = 's32[1]{0}', space=sflag, size = 0x4, scoped, tag = 'scoped memory for patch_embedding.1']
    %8 = vsyncpa [#allocation3], 0
    // Predicated region
    $region2: #{patch_embedding.1} parent=1 // pred_check
      _
    $region3: #{patch_embedding.1} parent=1 // pred_check_branch
      %10 = sbr.rel (0) target = $region5
    $region4: #{patch_embedding.1} parent=1 // pred_region
      _
    $region5: #{patch_embedding.1} parent=1 // pred_fallthru
      _
    // Predicated region
    $region6: #{patch_embedding.1} parent=1 // pred_check
      _
    $region7: #{patch_embedding.1} parent=1 // pred_check_branch
      %12 = sbr.rel (0) target = $region9
    $region8: #{patch_embedding.1} parent=1 // pred_region
      _
    $region9: #{patch_embedding.1} parent=1 // pred_fallthru
      _
    // Predicated region
    $region10: #{patch_embedding.1} parent=1 // pred_check
      _
    $region11: #{patch_embedding.1} parent=1 // pred_check_branch
      %14 = sbr.rel (0) target = $region13
    $region12: #{patch_embedding.1} parent=1 // pred_region
      _
    $region13: #{patch_embedding.1} parent=1 // pred_fallthru
      _
    %v16 = vld [vmem:[%s0] sm:$0xf]
    %v17 = vld [vmem:[%s0 + $0x4] sm:$0xf]
    %v18 = vld [vmem:[%s0 + $0x8] sm:$0xf]
    %v19 = vld [vmem:[%s0 + $0xc] sm:$0xf]
    %v20 = vld [vmem:[%s1] sm:$0xf]
    %v21 = vld [vmem:[%s1 + $0x4] sm:$0xf]
    %v22 = vld [vmem:[%s1 + $0x8] sm:$0xf]
    %v23 = vld [vmem:[%s1 + $0xc] sm:$0xf]
    %v24 = vld [vmem:[%s1 + $0x10] sm:$0xf]
    %v25 = vld [vmem:[%s1 + $0x14] sm:$0xf]
    %v26 = vld [vmem:[%s1 + $0x18] sm:$0xf]
    %v27 = vld [vmem:[%s1 + $0x1c] sm:$0xf]
    %v28 = vld [vmem:[%s2] sm:$0x1]
    %v30 = vlaneseq
    %v31 = vshrl.u32 %v30, 7
    %v32 = vsub.s32 0, %v31
    %v33 = vrot.slane %v28, %v32
    %v39 = vunpack.c.l.b16 %v16
    %v40 = vunpack.c.l.b16 %v17
    %v41 = vunpack.c.l.b16 %v18
    %v42 = vunpack.c.l.b16 %v19
    %v43 = vpack.c.b16 %v40, %v39
    %v44 = vpack.c.b16 %v42, %v41
    %v53 = vunpack.c.l.b16 %v20
    %v54 = vunpack.c.l.b16 %v21
    %v55 = vunpack.c.l.b16 %v22
    %v56 = vunpack.c.l.b16 %v23
    %v57 = vunpack.c.l.b16 %v24
    %v58 = vunpack.c.l.b16 %v25
    %v59 = vunpack.c.l.b16 %v26
    %v60 = vunpack.c.l.b16 %v27
    %v61 = vpack.c.b16 %v54, %v53
    %v62 = vpack.c.b16 %v56, %v55
    %v63 = vpack.c.b16 %v58, %v57
    %v64 = vpack.c.b16 %v60, %v59
    %vm69 = vcmask 523264
    %v71 = vsel %vm69, %v43, 0
    %v74 = vsel %vm69, %v44, 0
    %76 = vmatprep.subr.bf16.mxu0 0
    %77 = vmatpush1.bf16.msra.mxu0 %v61
    %78 = vmatprep.subr.bf16.mxu0 0
    %79 = vmatpush1.bf16.msra.mxu0 %v62
    %80 = vmatprep.subr.bf16.mxu0 0
    %81 = vmatpush1.bf16.msra.mxu0 %v63
    %82 = vmatprep.subr.bf16.mxu0 0
    %83 = vmatpush1.bf16.msra.mxu0 %v64
    %84 = vmatprep.subr.bf16.mxu0 0
    %85 = vmatpush1.bf16.msra.mxu0 0
    %86 = vmatprep.subr.bf16.mxu0 0
    %87 = vmatpush1.bf16.msra.mxu0 0
    %88 = vmatprep.subr.bf16.mxu0 0
    %89 = vmatpush1.bf16.msra.mxu0 0
    %90 = vmatprep.subr.bf16.mxu0 0
    %91 = vmatpush1.bf16.msra.mxu0 0
    %92 = vmatprep.subr.bf16.mxu0 0
    %93 = vmatpush1.bf16.msra.mxu0 0
    %94 = vmatprep.subr.bf16.mxu0 0
    %95 = vmatpush1.bf16.msra.mxu0 0
    %96 = vmatprep.subr.bf16.mxu0 0
    %97 = vmatpush1.bf16.msra.mxu0 0
    %98 = vmatprep.subr.bf16.mxu0 0
    %99 = vmatpush1.bf16.msra.mxu0 0
    %100 = vmatprep.subr.bf16.mxu0 0
    %101 = vmatpush1.bf16.msra.mxu0 0
    %102 = vmatprep.subr.bf16.mxu0 0
    %103 = vmatpush1.bf16.msra.mxu0 0
    %104 = vmatprep.subr.bf16.mxu0 0
    %105 = vmatpush1.bf16.msra.mxu0 0
    %106 = vmatprep.subr.bf16.mxu0 0
    %107 = vmatpush1.bf16.msra.mxu0 0
    %108 = vmatprep.mubr.bf16.mxu0 0
    %109 = vmatmul.mubr.bf16.gmra.mrb[0].mxu0 %v71
    %v110 = vpop.f32.mrb[0].mxu0
    %v111 = vadd.f32 %v33, %v110
    %v112 = vpop.f32.mrb[0].mxu0
    %v113 = vpop.f32.mrb[0].mxu0
    %v114 = vadd.f32 %v33, %v113
    %v115 = vpop.f32.mrb[0].mxu0
    %116 = vmatprep.mubr.bf16.mxu0 0
    %117 = vmatmul.mubr.bf16.gmra.mrb[0].mxu0 %v74
    %v118 = vpop.f32.mrb[0].mxu0
    %v119 = vadd.f32 %v33, %v118
    %v120 = vpop.f32.mrb[0].mxu0
    %v121 = vpop.f32.mrb[0].mxu0
    %v122 = vadd.f32 %v33, %v121
    %v123 = vpop.f32.mrb[0].mxu0
    %124 = vdwg.mxu0
    %vm125 = vcmask 261120
    %126 = vst.msk [vmem:[#allocation2] sm:$0xff] %vm125, %v111
    %127 = vst.msk [vmem:[#allocation2 + $0x8] sm:$0xff] %vm125, %v114
    %128 = vst.msk [vmem:[#allocation2 + $0x10] sm:$0xff] %vm125, %v119
    %129 = vst.msk [vmem:[#allocation2 + $0x18] sm:$0xff] %vm125, %v122
    // Predicated region
    $region14: #{patch_embedding.1} parent=1 // pred_check
      _
    $region15: #{patch_embedding.1} parent=1 // pred_check_branch
      %131 = sbr.rel (0) target = $region17
    $region16: #{patch_embedding.1} parent=1 // pred_region
      %s133 = ssub.s32 512, 512
      %134 = vsyncadd [#allocation3], %s133
      %s135 = sshll.u32 [#allocation2], 4
      %s136 = int_to_ptr.vmem [resolvable:$true] %s135
      %141 = dma.vmem_to_hbm [thread:$0]  %s136, 512, %s3, [#allocation3], 128, 128, 8
    $region17: #{patch_embedding.1} parent=1 // pred_fallthru
      _
    // Predicated region
    $region18: #{patch_embedding.1} parent=1 // pred_check
      _
    $region19: #{patch_embedding.1} parent=1 // pred_check_branch
      %143 = sbr.rel (0) target = $region21
    $region20: #{patch_embedding.1} parent=1 // pred_region
      %144 = dma.done [#allocation3], 512
    $region21: #{patch_embedding.1} parent=1 // pred_fallthru
      _
    %145 = vsyncpa [#allocation3], 1

</llo_original>
